<compile_context>
chip_gen: v6e
topology: v6e:2x2x1
jax: 0.10.0
libtpu: 0.0.40
codegen_flags: <defaults>
</compile_context>

<pallas_src>
import functools

import jax
import jax.numpy as jnp
from jax import lax
from jax.experimental import pallas as pl
from jax.experimental.pallas import tpu as pltpu

_RISK_OUT = 30  # fixed by the PyTorch module: nn.Linear(dim2//10*16, 30)


def _round8(n):
    return (n + 7) // 8 * 8


def _param_layout(input_dim, dim1, dim2, batch):
    """Row layout of the packed [rows, lanes] parameter slab (all offsets 8-aligned)."""
    specs = [
        ("w_enc", 2 * input_dim, dim1),      # blockdiag(enc1_w.T, enc2_w.T)
        ("b_enc", 2 * batch, dim1),          # enc1_b broadcast to B rows ; enc2_b to B rows
        ("w_head", dim1, 2 * dim2),          # [mu_w.T | ls_w.T]
        ("b_head", 1, 2 * dim2),             # [mu_b | ls_b]
        ("w_d1", 2 * dim2, 2 * dim1),        # blockdiag(d1l1_w.T, d2l1_w.T)
        ("b_d1", 1, 2 * dim1),               # [d1l1_b | d2l1_b]
        ("w_d2", 2 * dim1, 2 * input_dim),   # blockdiag(d1l2_w.T, d2l2_w.T)
        ("b_d2", 1, 2 * input_dim),          # [d1l2_b | d2l2_b]
        ("w_risk", 2 * dim2, _RISK_OUT),     # [w1r ; w2r]  (folded risk weights)
        ("b_risk", 1, _RISK_OUT),
    ]
    lanes = max(128, max(cols for _, _, cols in specs))
    layout, off = {}, 0
    for name, rows, cols in specs:
        layout[name] = (off, rows, cols)
        off += _round8(rows)
    return layout, off, lanes


def _block_diag(a, b):
    ra, ca = a.shape
    rb, cb = b.shape
    top = jnp.concatenate([a, jnp.zeros((ra, cb), a.dtype)], axis=1)
    bot = jnp.concatenate([jnp.zeros((rb, ca), a.dtype), b], axis=1)
    return jnp.concatenate([top, bot], axis=0)


def pack_params(params, batch):
    """One-time prep: transpose / fold / block-diag-fuse all weights into a single slab.

    Call once (outside the hot loop); the result is reused for every forward pass with
    the same batch size.
    """
    dim2, dim1 = params["mu_w"].shape
    input_dim = params["enc1_w"].shape[1]
    c = int(dim2 / 10 * 4)
    s = int(dim2 / 10 * 6)
    assert c + s == dim2, f"split {c}+{s} != dim2={dim2} (dim2 must be a multiple of 10)"
    assert params["risk_w"].shape[1] == c + 2 * s, "risk layer input width mismatch"
    f32 = jnp.float32

    w_enc = jnp.concatenate([params["enc1_w"].T, params["enc2_w"].T], axis=0)
    b_enc = jnp.concatenate([jnp.broadcast_to(params["enc1_b"], (batch, dim1)),
                             jnp.broadcast_to(params["enc2_b"], (batch, dim1))], axis=0)
    w_head = jnp.concatenate([params["mu_w"].T, params["ls_w"].T], axis=1)
    b_head = jnp.concatenate([params["mu_b"], params["ls_b"]], axis=1)
    w_d1 = _block_diag(params["d1l1_w"].T, params["d2l1_w"].T)
    b_d1 = jnp.concatenate([params["d1l1_b"], params["d2l1_b"]], axis=1)
    w_d2 = _block_diag(params["d1l2_w"].T, params["d2l2_w"].T)
    b_d2 = jnp.concatenate([params["d1l2_b"], params["d2l2_b"]], axis=1)
    # logits = 0.5*(comm1+comm2)@Wc + spe1@Ws1 + spe2@Ws2 + b
    #        = z1 @ [0.5*Wc ; Ws1] + z2 @ [0.5*Wc ; Ws2] + b = [z1|z2] @ [w1r ; w2r] + b
    risk_wt = params["risk_w"].T                      # [c+2s, 30]
    wc_half = risk_wt[:c] * 0.5
    w_risk = jnp.concatenate([wc_half, risk_wt[c:c + s],
                              wc_half, risk_wt[c + s:]], axis=0)   # [2*dim2, 30]
    b_risk = params["risk_b"]

    layout, total_rows, lanes = _param_layout(input_dim, dim1, dim2, batch)
    slab = jnp.zeros((total_rows, lanes), f32)
    for name, arr in [("w_enc", w_enc), ("b_enc", b_enc), ("w_head", w_head),
                      ("b_head", b_head), ("w_d1", w_d1), ("b_d1", b_d1),
                      ("w_d2", w_d2), ("b_d2", b_d2), ("w_risk", w_risk),
                      ("b_risk", b_risk)]:
        off, rows, cols = layout[name]
        slab = slab.at[off:off + rows, :cols].set(arr.astype(f32))
    return slab


def mlsurv_kernel(layout, batch, input_dim, dim1, dim2, c,
                  data_ref, p_ref,
                  dec_o, musig_o, z12_o, risk_o):
    B = batch

    def sec(name):  # static slice of the packed parameter slab -> zero-cost view + load
        off, rows, cols = layout[name]
        return p_ref[off:off + rows, 0:cols]

    w_enc, b_enc = sec("w_enc"), sec("b_enc")
    w_head, b_head = sec("w_head"), sec("b_head")
    w_d1, b_d1 = sec("w_d1"), sec("b_d1")
    w_d2, b_d2 = sec("w_d2"), sec("b_d2")
    w_risk, b_risk = sec("w_risk"), sec("b_risk")

    x_pair = data_ref[0:B, 0:2 * input_dim]   # [B, 2*D_in] = [x1 | x2]
    eps12 = data_ref[B:3 * B, 0:dim2]         # [2B, dim2]  = [eps1 ; eps2]

    # ---- encoders: block-diagonal fusion (one matmul, K = 2*D_in) ----
    lane_x = lax.broadcasted_iota(jnp.int32, x_pair.shape, 1)
    x_top = jnp.where(lane_x < input_dim, x_pair, 0.0)   # [x1 | 0]
    x_bot = jnp.where(lane_x < input_dim, 0.0, x_pair)   # [0 | x2]
    x_blk = jnp.concatenate([x_top, x_bot], axis=0)      # [2B, 2*D_in]
    h12 = jnp.maximum(
        jnp.dot(x_blk, w_enc, preferred_element_type=jnp.float32) + b_enc, 0.0)

    # ---- fused mu | log_sigma head (one matmul), exp only on the sigma lanes ----
    ms = jnp.dot(h12, w_head, preferred_element_type=jnp.float32) + b_head   # [2B, 2*dim2]
    lane_m = lax.broadcasted_iota(jnp.int32, ms.shape, 1)
    musig = jnp.where(lane_m < dim2, ms, jnp.exp(ms))    # [mu | sigma]
    z12 = musig[:, :dim2] + musig[:, dim2:] * eps12      # [2B, dim2] = [z1 ; z2]
    z1 = z12[:B]
    z2 = z12[B:]

    # ---- cross-reconstruction latents + block-diagonal decoders (2 matmuls) ----
    zp = jnp.concatenate([z1, z2], axis=1)               # [B, 2*dim2] = [z1 | z2]
    zq = jnp.concatenate([z2, z1], axis=1)               # [B, 2*dim2] = [z2 | z1]
    lane_z = lax.broadcasted_iota(jnp.int32, zp.shape, 1)
    comm_lane = (lane_z < c) | ((lane_z >= dim2) & (lane_z < dim2 + c))
    conn = jnp.where(comm_lane, zq, zp)                  # [connect1 | connect2]
    z_blk = jnp.concatenate([zp, conn], axis=0)          # [2B, 2*dim2]

    t = jnp.maximum(
        jnp.dot(z_blk, w_d1, preferred_element_type=jnp.float32) + b_d1, 0.0)  # [2B, 2*dim1]
    dec = jnp.maximum(
        jnp.dot(t, w_d2, preferred_element_type=jnp.float32) + b_d2, 0.0)      # [2B, 2*D_in]

    # ---- risk head with folded weights (one matmul) ----
    logits = jnp.dot(zp, w_risk, preferred_element_type=jnp.float32) + b_risk  # [B, 30]
    risk_o[...] = jax.nn.sigmoid(logits)

    # ---- writeback (dec_o is a full-width 128-lane unmasked store) ----
    dec_o[...] = dec
    musig_o[...] = musig
    z12_o[...] = z12


@functools.partial(jax.jit, static_argnames=("input_dim", "dim1", "dim2"))
def _mlsurv_apply(param_slab, x1, x2, eps1, eps2, *, input_dim, dim1, dim2):
    f32 = jnp.float32
    B = x1.shape[0]
    c = int(dim2 / 10 * 4)
    layout, total_rows, p_lanes = _param_layout(input_dim, dim1, dim2, B)
    assert param_slab.shape == (total_rows, p_lanes), \
        "parameter slab was packed for a different batch size / model dims"

    # Per-call data slab: rows 0:B = [x1 | x2], rows B:3B = [eps1 ; eps2] (lane-padded).
    d_lanes = max(128, 2 * input_dim, dim2)
    data = jnp.zeros((3 * B, d_lanes), f32)
    data = data.at[:B, :2 * input_dim].set(
        jnp.concatenate([x1.astype(f32), x2.astype(f32)], axis=1))
    data = data.at[B:, :dim2].set(
        jnp.concatenate([eps1.astype(f32), eps2.astype(f32)], axis=0))

    kernel = functools.partial(mlsurv_kernel, layout, B, input_dim, dim1, dim2, c)
    out_shape = (
        jax.ShapeDtypeStruct((2 * B, 2 * input_dim), f32),  # [dec1|dec2 ; dec3|dec4]
        jax.ShapeDtypeStruct((2 * B, 2 * dim2), f32),       # [mu|sigma], rows view1;view2
        jax.ShapeDtypeStruct((2 * B, dim2), f32),           # [z1 ; z2]
        jax.ShapeDtypeStruct((B, _RISK_OUT), f32),          # risk (sigmoid)
    )
    vmem = lambda: pl.BlockSpec(memory_space=pltpu.MemorySpace.VMEM)
    dec_slab, musig, z12, risk = pl.pallas_call(
        kernel,
        out_shape=out_shape,
        in_specs=[vmem(), vmem()],
        out_specs=tuple(vmem() for _ in out_shape),
    )(data, param_slab)

    # Thin, jit-fused unpacking to reproduce the original 14 outputs.
    dec1, dec2 = dec_slab[:B, :input_dim], dec_slab[:B, input_dim:]
    dec3, dec4 = dec_slab[B:, :input_dim], dec_slab[B:, input_dim:]
    mu1, sig1 = musig[:B, :dim2], musig[:B, dim2:]
    mu2, sig2 = musig[B:, :dim2], musig[B:, dim2:]
    z1, z2 = z12[:B], z12[B:]
    comm1, spe1 = z1[:, :c], z1[:, c:]
    comm2, spe2 = z2[:, :c], z2[:, c:]
    inputmlp = jnp.concatenate([(comm1 + comm2) * 0.5, spe1, spe2], axis=1)
    return (dec1, dec2, dec3, dec4, comm1, spe1, comm2, spe2,
            mu1, sig1, mu2, sig2, risk, inputmlp)


def mlsurv_forward(x1, x2, eps1, eps2, params, param_slab=None):
    """Fused MLSurv forward. Returns the same 14-tuple as the PyTorch module."""
    dim2, dim1 = params["mu_w"].shape
    input_dim = params["enc1_w"].shape[1]
    if param_slab is None:
        param_slab = pack_params(params, x1.shape[0])
    return _mlsurv_apply(param_slab, x1, x2, eps1, eps2,
                         input_dim=input_dim, dim1=dim1, dim2=dim2)


# ----------------------------- test harness -----------------------------

def _init_linear(key, out_f, in_f):
    # PyTorch default init: U(-1/sqrt(fan_in), 1/sqrt(fan_in)) for W and b.
    kw, kb = jax.random.split(key)
    bound = 1.0 / (in_f ** 0.5)
    w = jax.random.uniform(kw, (out_f, in_f), jnp.float32, -bound, bound)
    b = jax.random.uniform(kb, (1, out_f), jnp.float32, -bound, bound)
    return w, b


def make_params(key, input_dim, dim1, dim2):
    keys = jax.random.split(key, 9)
    p = {}
    p["enc1_w"], p["enc1_b"] = _init_linear(keys[0], dim1, input_dim)
    p["enc2_w"], p["enc2_b"] = _init_linear(keys[1], dim1, input_dim)
    p["mu_w"], p["mu_b"] = _init_linear(keys[2], dim2, dim1)
    p["ls_w"], p["ls_b"] = _init_linear(keys[3], dim2, dim1)
    p["d1l1_w"], p["d1l1_b"] = _init_linear(keys[4], dim1, dim2)
    p["d1l2_w"], p["d1l2_b"] = _init_linear(keys[5], input_dim, dim1)
    p["d2l1_w"], p["d2l1_b"] = _init_linear(keys[6], dim1, dim2)
    p["d2l2_w"], p["d2l2_b"] = _init_linear(keys[7], input_dim, dim1)
    p["risk_w"], p["risk_b"] = _init_linear(keys[8], 30, int(dim2 / 10 * 16))
    return p


def _reference_forward(x1, x2, eps1, eps2, p, c):
    """Pure-JAX transcription of the PyTorch forward (native [out,in] weights)."""
    lin = lambda x, w, b: x @ w.T + b
    relu = lambda v: jnp.maximum(v, 0.0)
    h1 = relu(lin(x1, p["enc1_w"], p["enc1_b"]))
    mu1 = lin(h1, p["mu_w"], p["mu_b"])
    sig1 = jnp.exp(lin(h1, p["ls_w"], p["ls_b"]))
    z1 = mu1 + sig1 * eps1
    comm1, spe1 = z1[:, :c], z1[:, c:]
    dec1 = relu(lin(relu(lin(z1, p["d1l1_w"], p["d1l1_b"])), p["d1l2_w"], p["d1l2_b"]))
    h2 = relu(lin(x2, p["enc2_w"], p["enc2_b"]))
    mu2 = lin(h2, p["mu_w"], p["mu_b"])
    sig2 = jnp.exp(lin(h2, p["ls_w"], p["ls_b"]))
    z2 = mu2 + sig2 * eps2
    comm2, spe2 = z2[:, :c], z2[:, c:]
    dec2 = relu(lin(relu(lin(z2, p["d2l1_w"], p["d2l1_b"])), p["d2l2_w"], p["d2l2_b"]))
    connect1 = jnp.concatenate([comm2, spe1], axis=1)
    dec3 = relu(lin(relu(lin(connect1, p["d1l1_w"], p["d1l1_b"])), p["d1l2_w"], p["d1l2_b"]))
    connect2 = jnp.concatenate([comm1, spe2], axis=1)
    dec4 = relu(lin(relu(lin(connect2, p["d2l1_w"], p["d2l1_b"])), p["d2l2_w"], p["d2l2_b"]))
    inputmlp = jnp.concatenate([(comm1 + comm2) * 0.5, spe1, spe2], axis=1)
    out = jax.nn.sigmoid(lin(inputmlp, p["risk_w"], p["risk_b"]))
    return (dec1, dec2, dec3, dec4, comm1, spe1, comm2, spe2,
            mu1, sig1, mu2, sig2, out, inputmlp)


if __name__ == "__main__":
    B, input_dim, dim1, dim2 = 8, 64, 32, 20

    root = jax.random.PRNGKey(0)
    k_params, k_x1, k_x2, k_e1, k_e2 = jax.random.split(root, 5)

    params = make_params(k_params, input_dim, dim1, dim2)
    x1 = jax.random.normal(k_x1, (B, input_dim), jnp.float32)
    x2 = jax.random.normal(k_x2, (B, input_dim), jnp.float32)
    # std_z draws (np.random.normal in the PyTorch module) made deterministic here.
    eps1 = jax.random.normal(k_e1, (B, dim2), jnp.float32)
    eps2 = jax.random.normal(k_e2, (B, dim2), jnp.float32)

    # One-time weight packing (hoisted out of the hot path), then the jitted forward.
    param_slab = jax.block_until_ready(pack_params(params, B))
    outs = mlsurv_forward(x1, x2, eps1, eps2, params, param_slab=param_slab)
    outs = jax.block_until_ready(outs)

    c = int(dim2 / 10 * 4)
    refs = _reference_forward(x1, x2, eps1, eps2, params, c)
    names = ["decoder1", "decoder2", "decoder3", "decoder4", "comm1", "spe1",
             "comm2", "spe2", "mu1", "sigma1", "mu2", "sigma2", "out", "inputmlp"]
    for name, o, r in zip(names, outs, refs):
        assert o.shape == r.shape, f"{name}: shape {o.shape} vs {r.shape}"
        assert jnp.allclose(o, r, atol=1e-4, rtol=1e-4), f"{name}: value mismatch"

    print("KERNEL_OK")
</pallas_src>

<mosaic_0001>
module attributes {stable_mosaic.version = 11 : i64} {
  func.func @mlsurv_kernel(%arg0: memref<24x128xf32, #tpu.memory_space<vmem>>, %arg1: memref<352x128xf32, #tpu.memory_space<vmem>>, %arg2: memref<16x128xf32, #tpu.memory_space<vmem>>, %arg3: memref<16x40xf32, #tpu.memory_space<vmem>>, %arg4: memref<16x20xf32, #tpu.memory_space<vmem>>, %arg5: memref<8x30xf32, #tpu.memory_space<vmem>>) attributes {dimension_semantics = [], scalar_prefetch = 0 : i64, scratch_operands = 0 : i64, tpu.core_type = #tpu.core_type<tc>} {
    %c0 = arith.constant 0 : index
    %c0_0 = arith.constant 0 : index
    %0 = vector.load %arg1[%c0, %c0_0] : memref<352x128xf32, #tpu.memory_space<vmem>>, vector<128x32xf32>
    %c128 = arith.constant 128 : index
    %c0_1 = arith.constant 0 : index
    %1 = vector.load %arg1[%c128, %c0_1] : memref<352x128xf32, #tpu.memory_space<vmem>>, vector<16x32xf32>
    %c144 = arith.constant 144 : index
    %c0_2 = arith.constant 0 : index
    %2 = vector.load %arg1[%c144, %c0_2] : memref<352x128xf32, #tpu.memory_space<vmem>>, vector<32x40xf32>
    %c176 = arith.constant 176 : index
    %c0_3 = arith.constant 0 : index
    %3 = vector.load %arg1[%c176, %c0_3] : memref<352x128xf32, #tpu.memory_space<vmem>>, vector<1x40xf32>
    %c184 = arith.constant 184 : index
    %c0_4 = arith.constant 0 : index
    %4 = vector.load %arg1[%c184, %c0_4] : memref<352x128xf32, #tpu.memory_space<vmem>>, vector<40x64xf32>
    %c224 = arith.constant 224 : index
    %c0_5 = arith.constant 0 : index
    %5 = vector.load %arg1[%c224, %c0_5] : memref<352x128xf32, #tpu.memory_space<vmem>>, vector<1x64xf32>
    %c232 = arith.constant 232 : index
    %c0_6 = arith.constant 0 : index
    %6 = vector.load %arg1[%c232, %c0_6] : memref<352x128xf32, #tpu.memory_space<vmem>>, vector<64x128xf32>
    %c296 = arith.constant 296 : index
    %c0_7 = arith.constant 0 : index
    %7 = vector.load %arg1[%c296, %c0_7] : memref<352x128xf32, #tpu.memory_space<vmem>>, vector<1x128xf32>
    %c304 = arith.constant 304 : index
    %c0_8 = arith.constant 0 : index
    %8 = vector.load %arg1[%c304, %c0_8] : memref<352x128xf32, #tpu.memory_space<vmem>>, vector<40x30xf32>
    %c344 = arith.constant 344 : index
    %c0_9 = arith.constant 0 : index
    %9 = vector.load %arg1[%c344, %c0_9] : memref<352x128xf32, #tpu.memory_space<vmem>>, vector<1x30xf32>
    %c0_10 = arith.constant 0 : index
    %c0_11 = arith.constant 0 : index
    %10 = vector.load %arg0[%c0_10, %c0_11] : memref<24x128xf32, #tpu.memory_space<vmem>>, vector<8x128xf32>
    %c8 = arith.constant 8 : index
    %c0_12 = arith.constant 0 : index
    %11 = vector.load %arg0[%c8, %c0_12] : memref<24x128xf32, #tpu.memory_space<vmem>>, vector<16x20xf32>
    %12 = tpu.iota {dimensions = array<i32: 1>} : vector<8x128xi32>
    %c64_i32 = arith.constant 64 : i32
    %13 = vector.broadcast %c64_i32 : i32 to vector<8x128xi32>
    %14 = arith.cmpi slt, %12, %13 : vector<8x128xi32>
    %cst = arith.constant 0.000000e+00 : f32
    %15 = vector.broadcast %cst : f32 to vector<8x128xf32>
    %16 = arith.select %14, %10, %15 : vector<8x128xi1>, vector<8x128xf32>
    %c64_i32_13 = arith.constant 64 : i32
    %17 = vector.broadcast %c64_i32_13 : i32 to vector<8x128xi32>
    %18 = arith.cmpi slt, %12, %17 : vector<8x128xi32>
    %cst_14 = arith.constant 0.000000e+00 : f32
    %19 = vector.broadcast %cst_14 : f32 to vector<8x128xf32>
    %20 = arith.select %18, %19, %10 : vector<8x128xi1>, vector<8x128xf32>
    %21 = tpu.concatenate %16, %20 in 0 : vector<8x128xf32>, vector<8x128xf32> -> vector<16x128xf32>
    %cst_15 = arith.constant dense<0.000000e+00> : vector<16x32xf32>
    %22 = tpu.matmul %21, %0, %cst_15 {dimension_numbers = #tpu.dot_dimension_numbers<[1], [0], [0], [1], [0, 0, 1, 1], [], []>} : vector<16x128xf32>, vector<128x32xf32>, vector<16x32xf32> -> vector<16x32xf32>
    %23 = arith.addf %22, %1 : vector<16x32xf32>
    %cst_16 = arith.constant 0.000000e+00 : f32
    %24 = vector.broadcast %cst_16 : f32 to vector<16x32xf32>
    %25 = arith.maximumf %23, %24 : vector<16x32xf32>
    %cst_17 = arith.constant dense<0.000000e+00> : vector<16x40xf32>
    %26 = tpu.matmul %25, %2, %cst_17 {dimension_numbers = #tpu.dot_dimension_numbers<[1], [0], [0], [1], [0, 0, 1, 1], [], []>} : vector<16x32xf32>, vector<32x40xf32>, vector<16x40xf32> -> vector<16x40xf32>
    %27 = vector.broadcast %3 : vector<1x40xf32> to vector<16x40xf32>
    %28 = arith.addf %26, %27 : vector<16x40xf32>
    %29 = tpu.iota {dimensions = array<i32: 1>} : vector<16x40xi32>
    %c20_i32 = arith.constant 20 : i32
    %30 = vector.broadcast %c20_i32 : i32 to vector<16x40xi32>
    %31 = arith.cmpi slt, %29, %30 : vector<16x40xi32>
    %32 = math.exp %28 : vector<16x40xf32>
    %33 = arith.select %31, %28, %32 : vector<16x40xi1>, vector<16x40xf32>
    %34 = vector.extract_strided_slice %33 {offsets = [0, 0], sizes = [16, 20], strides = [1, 1]} : vector<16x40xf32> to vector<16x20xf32>
    %35 = vector.extract_strided_slice %33 {offsets = [0, 20], sizes = [16, 20], strides = [1, 1]} : vector<16x40xf32> to vector<16x20xf32>
    %36 = arith.mulf %35, %11 : vector<16x20xf32>
    %37 = arith.addf %34, %36 : vector<16x20xf32>
    %38 = vector.extract_strided_slice %37 {offsets = [0, 0], sizes = [8, 20], strides = [1, 1]} : vector<16x20xf32> to vector<8x20xf32>
    %39 = vector.extract_strided_slice %37 {offsets = [8, 0], sizes = [8, 20], strides = [1, 1]} : vector<16x20xf32> to vector<8x20xf32>
    %40 = tpu.concatenate %38, %39 in 1 : vector<8x20xf32>, vector<8x20xf32> -> vector<8x40xf32>
    %41 = tpu.concatenate %39, %38 in 1 : vector<8x20xf32>, vector<8x20xf32> -> vector<8x40xf32>
    %42 = tpu.iota {dimensions = array<i32: 1>} : vector<8x40xi32>
    %c8_i32 = arith.constant 8 : i32
    %43 = vector.broadcast %c8_i32 : i32 to vector<8x40xi32>
    %44 = arith.cmpi slt, %42, %43 : vector<8x40xi32>
    %c20_i32_18 = arith.constant 20 : i32
    %45 = vector.broadcast %c20_i32_18 : i32 to vector<8x40xi32>
    %46 = arith.cmpi sge, %42, %45 : vector<8x40xi32>
    %c28_i32 = arith.constant 28 : i32
    %47 = vector.broadcast %c28_i32 : i32 to vector<8x40xi32>
    %48 = arith.cmpi slt, %42, %47 : vector<8x40xi32>
    %49 = arith.andi %46, %48 : vector<8x40xi1>
    %50 = arith.ori %44, %49 : vector<8x40xi1>
    %51 = arith.select %50, %41, %40 : vector<8x40xi1>, vector<8x40xf32>
    %52 = tpu.concatenate %40, %51 in 0 : vector<8x40xf32>, vector<8x40xf32> -> vector<16x40xf32>
    %cst_19 = arith.constant dense<0.000000e+00> : vector<16x64xf32>
    %53 = tpu.matmul %52, %4, %cst_19 {dimension_numbers = #tpu.dot_dimension_numbers<[1], [0], [0], [1], [0, 0, 1, 1], [], []>} : vector<16x40xf32>, vector<40x64xf32>, vector<16x64xf32> -> vector<16x64xf32>
    %54 = vector.broadcast %5 : vector<1x64xf32> to vector<16x64xf32>
    %55 = arith.addf %53, %54 : vector<16x64xf32>
    %cst_20 = arith.constant 0.000000e+00 : f32
    %56 = vector.broadcast %cst_20 : f32 to vector<16x64xf32>
    %57 = arith.maximumf %55, %56 : vector<16x64xf32>
    %cst_21 = arith.constant dense<0.000000e+00> : vector<16x128xf32>
    %58 = tpu.matmul %57, %6, %cst_21 {dimension_numbers = #tpu.dot_dimension_numbers<[1], [0], [0], [1], [0, 0, 1, 1], [], []>} : vector<16x64xf32>, vector<64x128xf32>, vector<16x128xf32> -> vector<16x128xf32>
    %59 = vector.broadcast %7 : vector<1x128xf32> to vector<16x128xf32>
    %60 = arith.addf %58, %59 : vector<16x128xf32>
    %cst_22 = arith.constant 0.000000e+00 : f32
    %61 = vector.broadcast %cst_22 : f32 to vector<16x128xf32>
    %62 = arith.maximumf %60, %61 : vector<16x128xf32>
    %cst_23 = arith.constant dense<0.000000e+00> : vector<8x30xf32>
    %63 = tpu.matmul %40, %8, %cst_23 {dimension_numbers = #tpu.dot_dimension_numbers<[1], [0], [0], [1], [0, 0, 1, 1], [], []>} : vector<8x40xf32>, vector<40x30xf32>, vector<8x30xf32> -> vector<8x30xf32>
    %64 = vector.broadcast %9 : vector<1x30xf32> to vector<8x30xf32>
    %65 = arith.addf %63, %64 : vector<8x30xf32>
    %66 = arith.negf %65 : vector<8x30xf32>
    %67 = math.exp %66 : vector<8x30xf32>
    %cst_24 = arith.constant 1.000000e+00 : f32
    %68 = vector.broadcast %cst_24 : f32 to vector<8x30xf32>
    %69 = arith.addf %68, %67 : vector<8x30xf32>
    %70 = arith.divf %68, %69 : vector<8x30xf32>
    %c0_25 = arith.constant 0 : index
    %c0_26 = arith.constant 0 : index
    %71 = vector.load %arg5[%c0_25, %c0_26] : memref<8x30xf32, #tpu.memory_space<vmem>>, vector<8x30xf32>
    tpu.vector_store %arg5[%c0_25, %c0_26], %70 {strides = array<i32>} : memref<8x30xf32, #tpu.memory_space<vmem>>, vector<8x30xf32>,
    %c0_27 = arith.constant 0 : index
    %c0_28 = arith.constant 0 : index
    %72 = vector.load %arg2[%c0_27, %c0_28] : memref<16x128xf32, #tpu.memory_space<vmem>>, vector<16x128xf32>
    tpu.vector_store %arg2[%c0_27, %c0_28], %62 {strides = array<i32>} : memref<16x128xf32, #tpu.memory_space<vmem>>, vector<16x128xf32>,
    %c0_29 = arith.constant 0 : index
    %c0_30 = arith.constant 0 : index
    %73 = vector.load %arg3[%c0_29, %c0_30] : memref<16x40xf32, #tpu.memory_space<vmem>>, vector<16x40xf32>
    tpu.vector_store %arg3[%c0_29, %c0_30], %33 {strides = array<i32>} : memref<16x40xf32, #tpu.memory_space<vmem>>, vector<16x40xf32>,
    %c0_31 = arith.constant 0 : index
    %c0_32 = arith.constant 0 : index
    %74 = vector.load %arg4[%c0_31, %c0_32] : memref<16x20xf32, #tpu.memory_space<vmem>>, vector<16x20xf32>
    tpu.vector_store %arg4[%c0_31, %c0_32], %37 {strides = array<i32>} : memref<16x20xf32, #tpu.memory_space<vmem>>, vector<16x20xf32>,
    return
  }
}

</mosaic_0001>

<llo_original>
// kernel: _mlsurv_apply.1
$region0: #{_mlsurv_apply.1}
  #allocation0 [shape = 'u32[]', space=smem, size = 0x4, offset = 0x4, fixed_abs, tag = 'smem constant byte address 0x4 - core index']
  #allocation1 [shape = 'u32[144,128]{1,0:T(1,128)}', space=vmem, size = 0x12000, scoped, tag = 'internal scratch']
  %s0 = inlined_call_operand.vmem [shape: f32[24,128], index: 0, kind: input, shape index: {}]
  %s1 = inlined_call_operand.hbm [shape: f32[352,128], index: 1, kind: input, shape index: {}]
  %s2 = inlined_call_operand.vmem [shape: f32[16,128], index: 2, kind: output, shape index: {0}]
  %s3 = inlined_call_operand.vmem [shape: f32[16,40], index: 3, kind: output, shape index: {1}]
  %s4 = inlined_call_operand.vmem [shape: f32[16,20], index: 4, kind: output, shape index: {2}]
  %s5 = inlined_call_operand.hbm [shape: f32[8,30], index: 5, kind: output, shape index: {3}]
  %6 = xla_tuple %s2, %s3, %s4, %s5
  %s7 = sld [smem:[#allocation0]]
  $region46: #{_mlsurv_apply.1} parent=0
    _
  %s9 = ssub.s32 1, %s7
  %s10 = scalar_select 0, %s9, %s7
  $region1: #{_mlsurv_apply.1} parent=0
    #allocation2 [shape = 'u8[180224]{0}', space=vmem, size = 0x2c000, scoped, tag = 'input window, operand 1, single buffered']
    #allocation3 [shape = 's32[1]{0}', space=sflag, size = 0x4, scoped, tag = 'scoped memory for _mlsurv_apply.1']
    #allocation4 [shape = 's32[1]{0}', space=sflag, size = 0x4, scoped, tag = 'scoped memory for _mlsurv_apply.1']
    #allocation5 [shape = 'u8[4096]{0}', space=vmem, size = 0x1000, scoped, tag = 'output window, operand 3, single buffered']
    %11 = vsyncpa [#allocation3], 0
    %12 = vsyncpa [#allocation4], 0
    // Predicated region
    $region2: #{_mlsurv_apply.1} parent=1 // pred_check
      _
    $region3: #{_mlsurv_apply.1} parent=1 // pred_check_branch
      %14 = sbr.rel (0) target = $region5
    $region4: #{_mlsurv_apply.1} parent=1 // pred_region
      _
    $region5: #{_mlsurv_apply.1} parent=1 // pred_fallthru
      _
    // Predicated region
    $region6: #{_mlsurv_apply.1} parent=1 // pred_check
      _
    $region7: #{_mlsurv_apply.1} parent=1 // pred_check_branch
      %16 = sbr.rel (0) target = $region9
    $region8: #{_mlsurv_apply.1} parent=1 // pred_region
      %s18 = ssub.s32 5632, 5632
      %19 = vsyncadd [#allocation3], %s18
      %s20 = sshll.u32 [#allocation2], 4
      %s21 = int_to_ptr.vmem [resolvable:$true] %s20
      %26 = dma.hbm_to_vmem [thread:$0]  %s1, 5632, %s21, [#allocation3], 128, 128, 8
    $region9: #{_mlsurv_apply.1} parent=1 // pred_fallthru
      _
    // Predicated region
    $region10: #{_mlsurv_apply.1} parent=1 // pred_check
      _
    $region11: #{_mlsurv_apply.1} parent=1 // pred_check_branch
      %28 = sbr.rel (0) target = $region13
    $region12: #{_mlsurv_apply.1} parent=1 // pred_region
      %29 = dma.done [#allocation3], 5632
    $region13: #{_mlsurv_apply.1} parent=1 // pred_fallthru
      _
    %v30 = vld [vmem:[#allocation2] sm:$0xff]
    %v31 = vld [vmem:[#allocation2 + $0x8] sm:$0xff]
    %v32 = vld [vmem:[#allocation2 + $0x10] sm:$0xff]
    %v33 = vld [vmem:[#allocation2 + $0x18] sm:$0xff]
    %v34 = vld [vmem:[#allocation2 + $0x20] sm:$0xff]
    %v35 = vld [vmem:[#allocation2 + $0x28] sm:$0xff]
    %v36 = vld [vmem:[#allocation2 + $0x30] sm:$0xff]
    %v37 = vld [vmem:[#allocation2 + $0x38] sm:$0xff]
    %v38 = vld [vmem:[#allocation2 + $0x40] sm:$0xff]
    %v39 = vld [vmem:[#allocation2 + $0x48] sm:$0xff]
    %v40 = vld [vmem:[#allocation2 + $0x50] sm:$0xff]
    %v41 = vld [vmem:[#allocation2 + $0x58] sm:$0xff]
    %v42 = vld [vmem:[#allocation2 + $0x60] sm:$0xff]
    %v43 = vld [vmem:[#allocation2 + $0x68] sm:$0xff]
    %v44 = vld [vmem:[#allocation2 + $0x70] sm:$0xff]
    %v45 = vld [vmem:[#allocation2 + $0x78] sm:$0xff]
    %v46 = vld [vmem:[#allocation2 + $0x80] sm:$0xff]
    %v47 = vld [vmem:[#allocation2 + $0x88] sm:$0xff]
    %v48 = vld [vmem:[#allocation2 + $0x90] sm:$0xff]
    %v49 = vld [vmem:[#allocation2 + $0x98] sm:$0xff]
    %v50 = vld [vmem:[#allocation2 + $0xa0] sm:$0xff]
    %v51 = vld [vmem:[#allocation2 + $0xa8] sm:$0xff]
    %v52 = vld [vmem:[#allocation2 + $0xb0] sm:$0x1]
    %v53 = vld [vmem:[#allocation2 + $0xb8] sm:$0xff]
    %v54 = vld [vmem:[#allocation2 + $0xc0] sm:$0xff]
    %v55 = vld [vmem:[#allocation2 + $0xc8] sm:$0xff]
    %v56 = vld [vmem:[#allocation2 + $0xd0] sm:$0xff]
    %v57 = vld [vmem:[#allocation2 + $0xd8] sm:$0xff]
    %v58 = vld [vmem:[#allocation2 + $0xe0] sm:$0x1]
    %v59 = vld [vmem:[#allocation2 + $0xe8] sm:$0xff]
    %v60 = vld [vmem:[#allocation2 + $0xf0] sm:$0xff]
    %v61 = vld [vmem:[#allocation2 + $0xf8] sm:$0xff]
    %v62 = vld [vmem:[#allocation2 + $0x100] sm:$0xff]
    %v63 = vld [vmem:[#allocation2 + $0x108] sm:$0xff]
    %v64 = vld [vmem:[#allocation2 + $0x110] sm:$0xff]
    %v65 = vld [vmem:[#allocation2 + $0x118] sm:$0xff]
    %v66 = vld [vmem:[#allocation2 + $0x120] sm:$0xff]
    %v67 = vld [vmem:[#allocation2 + $0x128] sm:$0x1]
    %v68 = vld [vmem:[#allocation2 + $0x130] sm:$0xff]
    %v69 = vld [vmem:[#allocation2 + $0x138] sm:$0xff]
    %v70 = vld [vmem:[#allocation2 + $0x140] sm:$0xff]
    %v71 = vld [vmem:[#allocation2 + $0x148] sm:$0xff]
    %v72 = vld [vmem:[#allocation2 + $0x150] sm:$0xff]
    %v73 = vld [vmem:[#allocation2 + $0x158] sm:$0x1]
    %v74 = vld [vmem:[%s0] sm:$0xff]
    %v75 = vld [vmem:[%s0 + $0x8] sm:$0xff]
    %v76 = vld [vmem:[%s0 + $0x10] sm:$0xff]
    %v77 = vlaneseq
    %v78 = vand.u32 %v77, 127
    %vm79 = vcmp.lt.s32.totalorder %v78, 64
    %v80 = vsel %vm79, %v74, 0.0
    %v81 = vsel %vm79, 0.0, %v74
    %82 = vmatprep.subr.mxu0 0.0
    %83 = vmatpush1.msra.mxu0 %v45
    %84 = vmatprep.subr.mxu0 0.0
    %85 = vmatpush1.msra.mxu0 %v44
    %86 = vmatprep.subr.mxu0 0.0
    %87 = vmatpush1.msra.mxu0 %v43
    %88 = vmatprep.subr.mxu0 0.0
    %89 = vmatpush1.msra.mxu0 %v42
    %90 = vmatprep.subr.mxu0 0.0
    %91 = vmatpush1.msra.mxu0 %v41
    %92 = vmatprep.subr.mxu0 0.0
    %93 = vmatpush1.msra.mxu0 %v40
    %94 = vmatprep.subr.mxu0 0.0
    %95 = vmatpush1.msra.mxu0 %v39
    %96 = vmatprep.subr.mxu0 0.0
    %97 = vmatpush1.msra.mxu0 %v38
    %98 = vmatprep.subr.mxu0 0.0
    %99 = vmatpush1.msra.mxu0 %v37
    %100 = vmatprep.subr.mxu0 0.0
    %101 = vmatpush1.msra.mxu0 %v36
    %102 = vmatprep.subr.mxu0 0.0
    %103 = vmatpush1.msra.mxu0 %v35
    %104 = vmatprep.subr.mxu0 0.0
    %105 = vmatpush1.msra.mxu0 %v34
    %106 = vmatprep.subr.mxu0 0.0
    %107 = vmatpush1.msra.mxu0 %v33
    %108 = vmatprep.subr.mxu0 0.0
    %109 = vmatpush1.msra.mxu0 %v32
    %110 = vmatprep.subr.mxu0 0.0
    %111 = vmatpush1.msra.mxu0 %v31
    %112 = vmatprep.subr.mxu0 0.0
    %113 = vmatpush1.msra.mxu0 %v30
    %114 = vmatprep.subr.mxu0 0.0
    %115 = vmatpush2.msra.mxu0 0.0
    %116 = vmatprep.subr.mxu0 0.0
    %117 = vmatpush2.msra.mxu0 0.0
    %118 = vmatprep.subr.mxu0 0.0
    %119 = vmatpush2.msra.mxu0 0.0
    %120 = vmatprep.subr.mxu0 0.0
    %121 = vmatpush2.msra.mxu0 0.0
    %122 = vmatprep.subr.mxu0 0.0
    %123 = vmatpush2.msra.mxu0 0.0
    %124 = vmatprep.subr.mxu0 0.0
    %125 = vmatpush2.msra.mxu0 0.0
    %126 = vmatprep.subr.mxu0 0.0
    %127 = vmatpush2.msra.mxu0 0.0
    %128 = vmatprep.subr.mxu0 0.0
    %129 = vmatpush2.msra.mxu0 0.0
    %130 = vmatprep.subr.mxu0 0.0
    %131 = vmatpush2.msra.mxu0 0.0
    %132 = vmatprep.subr.mxu0 0.0
    %133 = vmatpush2.msra.mxu0 0.0
    %134 = vmatprep.subr.mxu0 0.0
    %135 = vmatpush2.msra.mxu0 0.0
    %136 = vmatprep.subr.mxu0 0.0
    %137 = vmatpush2.msra.mxu0 0.0
    %138 = vmatprep.subr.mxu0 0.0
    %139 = vmatpush2.msra.mxu0 0.0
    %140 = vmatprep.subr.mxu0 0.0
    %141 = vmatpush2.msra.mxu0 0.0
    %142 = vmatprep.subr.mxu0 0.0
    %143 = vmatpush2.msra.mxu0 0.0
    %144 = vmatprep.subr.mxu0 0.0
    %145 = vmatpush2.msra.mxu0 0.0
    %146 = vmatprep.mubr.f32.mxu0 0.0
    %147 = vmatmul.mubr.f32.gmra.mxu0 %v80
    %v148 = vpop.f32.mrf.mxu0
    %v149 = vadd.f32 %v46, %v148
    %v150 = vpop.f32.mrf.mxu0
    %151 = vmatprep.mubr.f32.mxu0 0.0
    %152 = vmatmul.mubr.f32.gmra.mxu0 %v81
    %v153 = vpop.f32.mrf.mxu0
    %v154 = vadd.f32 %v47, %v153
    %v155 = vpop.f32.mrf.mxu0
    %156 = vdwg.mxu0
    %v157 = vmax.f32 %v149, 0.0
    %v158 = vmax.f32 %v154, 0.0
    %v159 = vlaneseq
    %v160 = vshrl.u32 %v159, 7
    %v161 = vsub.s32 0, %v160
    %v162 = vrot.slane %v52, %v161
    %vm163 = vcmask 261120
    %v165 = vsel %vm163, %v157, 0
    %v168 = vsel %vm163, %v158, 0
    %170 = vmatprep.subr.mxu0 0.0
    %171 = vmatpush1.msra.mxu0 0.0
    %172 = vmatprep.subr.mxu0 0.0
    %173 = vmatpush1.msra.mxu0 0.0
    %174 = vmatprep.subr.mxu0 0.0
    %175 = vmatpush1.msra.mxu0 0.0
    %176 = vmatprep.subr.mxu0 0.0
    %177 = vmatpush1.msra.mxu0 0.0
    %178 = vmatprep.subr.mxu0 0.0
    %179 = vmatpush1.msra.mxu0 0.0
    %180 = vmatprep.subr.mxu0 0.0
    %181 = vmatpush1.msra.mxu0 0.0
    %182 = vmatprep.subr.mxu0 0.0
    %183 = vmatpush1.msra.mxu0 0.0
    %184 = vmatprep.subr.mxu0 0.0
    %185 = vmatpush1.msra.mxu0 0.0
    %186 = vmatprep.subr.mxu0 0.0
    %187 = vmatpush1.msra.mxu0 0.0
    %188 = vmatprep.subr.mxu0 0.0
    %189 = vmatpush1.msra.mxu0 0.0
    %190 = vmatprep.subr.mxu0 0.0
    %191 = vmatpush1.msra.mxu0 0.0
    %192 = vmatprep.subr.mxu0 0.0
    %193 = vmatpush1.msra.mxu0 0.0
    %194 = vmatprep.subr.mxu0 0.0
    %195 = vmatpush1.msra.mxu0 %v51
    %196 = vmatprep.subr.mxu0 0.0
    %197 = vmatpush1.msra.mxu0 %v50
    %198 = vmatprep.subr.mxu0 0.0
    %199 = vmatpush1.msra.mxu0 %v49
    %200 = vmatprep.subr.mxu0 0.0
    %201 = vmatpush1.msra.mxu0 %v48
    %202 = vmatprep.subr.mxu0 0.0
    %203 = vmatpush2.msra.mxu0 0.0
    %204 = vmatprep.subr.mxu0 0.0
    %205 = vmatpush2.msra.mxu0 0.0
    %206 = vmatprep.subr.mxu0 0.0
    %207 = vmatpush2.msra.mxu0 0.0
    %208 = vmatprep.subr.mxu0 0.0
    %209 = vmatpush2.msra.mxu0 0.0
    %210 = vmatprep.subr.mxu0 0.0
    %211 = vmatpush2.msra.mxu0 0.0
    %212 = vmatprep.subr.mxu0 0.0
    %213 = vmatpush2.msra.mxu0 0.0
    %214 = vmatprep.subr.mxu0 0.0
    %215 = vmatpush2.msra.mxu0 0.0
    %216 = vmatprep.subr.mxu0 0.0
    %217 = vmatpush2.msra.mxu0 0.0
    %218 = vmatprep.subr.mxu0 0.0
    %219 = vmatpush2.msra.mxu0 0.0
    %220 = vmatprep.subr.mxu0 0.0
    %221 = vmatpush2.msra.mxu0 0.0
    %222 = vmatprep.subr.mxu0 0.0
    %223 = vmatpush2.msra.mxu0 0.0
    %224 = vmatprep.subr.mxu0 0.0
    %225 = vmatpush2.msra.mxu0 0.0
    %226 = vmatprep.subr.mxu0 0.0
    %227 = vmatpush2.msra.mxu0 0.0
    %228 = vmatprep.subr.mxu0 0.0
    %229 = vmatpush2.msra.mxu0 0.0
    %230 = vmatprep.subr.mxu0 0.0
    %231 = vmatpush2.msra.mxu0 0.0
    %232 = vmatprep.subr.mxu0 0.0
    %233 = vmatpush2.msra.mxu0 0.0
    %234 = vmatprep.mubr.f32.mxu0 0.0
    %235 = vmatmul.mubr.f32.gmra.mxu0 %v165
    %v236 = vpop.f32.mrf.mxu0
    %v237 = vadd.f32 %v162, %v236
    %v238 = vpop.f32.mrf.mxu0
    %239 = vmatprep.mubr.f32.mxu0 0.0
    %240 = vmatmul.mubr.f32.gmra.mxu0 %v168
    %v241 = vpop.f32.mrf.mxu0
    %v242 = vadd.f32 %v162, %v241
    %v243 = vpop.f32.mrf.mxu0
    %244 = vdwg.mxu0
    %vm245 = vcmp.lt.s32.totalorder %v78, 20
    %v246 = vmul.f32 %v237, 1.442695
    %v247 = vpow.pop %v246
    %v248 = vmul.f32 %v242, 1.442695
    %v249 = vpow.pop %v248
    %v250 = vsel %vm245, %v237, %v247
    %v251 = vsel %vm245, %v242, %v249
    %254 = vrot.lane.b32.xlu0 %v75, 20
    %v255 = vpop.permute.xlu0 %254
    %256 = vrot.lane.b32.xlu0 %v76, 20
    %v257 = vpop.permute.xlu0 %256
    %v260 = vmul.f32 %v250, %v255
    %v261 = vmul.f32 %v251, %v257
    %264 = vrot.lane.b32.xlu0 %v260, 108
    %v265 = vpop.permute.xlu0 %264
    %266 = vrot.lane.b32.xlu0 %v261, 108
    %v267 = vpop.permute.xlu0 %266
    %v270 = vadd.f32 %v250, %v265
    %v271 = vadd.f32 %v251, %v267
    %273 = vrot.lane.b32.xlu0 %v271, 20
    %v274 = vpop.permute.xlu0 %273
    %vm276 = vcmask 162816
    %v277 = vsel %vm276, %v270, %v274
    %279 = vrot.lane.b32.xlu0 %v270, 20
    %v280 = vpop.permute.xlu0 %279
    %v282 = vsel %vm276, %v271, %v280
    %vm283 = vcmp.lt.s32.totalorder %v78, 8
    %vm284 = vcmp.ge.s32.totalorder %v78, 20
    %vm285 = vcmp.lt.s32.totalorder %v78, 28
    %vm286 = vmand %vm284, %vm285
    %vm287 = vmor %vm283, %vm286
    %v288 = vsel %vm287, %v282, %v277
    %v289 = vlaneseq
    %v290 = vshrl.u32 %v289, 7
    %v291 = vsub.s32 0, %v290
    %v292 = vrot.slane %v58, %v291
    %vm293 = vcmask 326656
    %v295 = vsel %vm293, %v277, 0
    %v298 = vsel %vm293, %v288, 0
    %300 = vmatprep.subr.mxu0 0.0
    %301 = vmatpush1.msra.mxu0 0.0
    %302 = vmatprep.subr.mxu0 0.0
    %303 = vmatpush1.msra.mxu0 0.0
    %304 = vmatprep.subr.mxu0 0.0
    %305 = vmatpush1.msra.mxu0 0.0
    %306 = vmatprep.subr.mxu0 0.0
    %307 = vmatpush1.msra.mxu0 0.0
    %308 = vmatprep.subr.mxu0 0.0
    %309 = vmatpush1.msra.mxu0 0.0
    %310 = vmatprep.subr.mxu0 0.0
    %311 = vmatpush1.msra.mxu0 0.0
    %312 = vmatprep.subr.mxu0 0.0
    %313 = vmatpush1.msra.mxu0 0.0
    %314 = vmatprep.subr.mxu0 0.0
    %315 = vmatpush1.msra.mxu0 0.0
    %316 = vmatprep.subr.mxu0 0.0
    %317 = vmatpush1.msra.mxu0 0.0
    %318 = vmatprep.subr.mxu0 0.0
    %319 = vmatpush1.msra.mxu0 0.0
    %320 = vmatprep.subr.mxu0 0.0
    %321 = vmatpush1.msra.mxu0 0.0
    %322 = vmatprep.subr.mxu0 0.0
    %323 = vmatpush1.msra.mxu0 %v57
    %324 = vmatprep.subr.mxu0 0.0
    %325 = vmatpush1.msra.mxu0 %v56
    %326 = vmatprep.subr.mxu0 0.0
    %327 = vmatpush1.msra.mxu0 %v55
    %328 = vmatprep.subr.mxu0 0.0
    %329 = vmatpush1.msra.mxu0 %v54
    %330 = vmatprep.subr.mxu0 0.0
    %331 = vmatpush1.msra.mxu0 %v53
    %332 = vmatprep.subr.mxu0 0.0
    %333 = vmatpush2.msra.mxu0 0.0
    %334 = vmatprep.subr.mxu0 0.0
    %335 = vmatpush2.msra.mxu0 0.0
    %336 = vmatprep.subr.mxu0 0.0
    %337 = vmatpush2.msra.mxu0 0.0
    %338 = vmatprep.subr.mxu0 0.0
    %339 = vmatpush2.msra.mxu0 0.0
    %340 = vmatprep.subr.mxu0 0.0
    %341 = vmatpush2.msra.mxu0 0.0
    %342 = vmatprep.subr.mxu0 0.0
    %343 = vmatpush2.msra.mxu0 0.0
    %344 = vmatprep.subr.mxu0 0.0
    %345 = vmatpush2.msra.mxu0 0.0
    %346 = vmatprep.subr.mxu0 0.0
    %347 = vmatpush2.msra.mxu0 0.0
    %348 = vmatprep.subr.mxu0 0.0
    %349 = vmatpush2.msra.mxu0 0.0
    %350 = vmatprep.subr.mxu0 0.0
    %351 = vmatpush2.msra.mxu0 0.0
    %352 = vmatprep.subr.mxu0 0.0
    %353 = vmatpush2.msra.mxu0 0.0
    %354 = vmatprep.subr.mxu0 0.0
    %355 = vmatpush2.msra.mxu0 0.0
    %356 = vmatprep.subr.mxu0 0.0
    %357 = vmatpush2.msra.mxu0 0.0
    %358 = vmatprep.subr.mxu0 0.0
    %359 = vmatpush2.msra.mxu0 0.0
    %360 = vmatprep.subr.mxu0 0.0
    %361 = vmatpush2.msra.mxu0 0.0
    %362 = vmatprep.subr.mxu0 0.0
    %363 = vmatpush2.msra.mxu0 0.0
    %364 = vmatprep.mubr.f32.mxu0 0.0
    %365 = vmatmul.mubr.f32.gmra.mxu0 %v295
    %v366 = vpop.f32.mrf.mxu0
    %v367 = vadd.f32 %v292, %v366
    %v368 = vpop.f32.mrf.mxu0
    %369 = vmatprep.mubr.f32.mxu0 0.0
    %370 = vmatmul.mubr.f32.gmra.mxu0 %v298
    %v371 = vpop.f32.mrf.mxu0
    %v372 = vadd.f32 %v292, %v371
    %v373 = vpop.f32.mrf.mxu0
    %374 = vdwg.mxu0
    %v375 = vmax.f32 %v367, 0.0
    %v376 = vmax.f32 %v372, 0.0
    %v377 = vlaneseq
    %v378 = vshrl.u32 %v377, 7
    %v379 = vsub.s32 0, %v378
    %v380 = vrot.slane %v67, %v379
    %vm381 = vcmask 523264
    %v383 = vsel %vm381, %v375, 0
    %v386 = vsel %vm381, %v376, 0
    %388 = vmatprep.subr.mxu0 0.0
    %389 = vmatpush1.msra.mxu0 0.0
    %390 = vmatprep.subr.mxu0 0.0
    %391 = vmatpush1.msra.mxu0 0.0
    %392 = vmatprep.subr.mxu0 0.0
    %393 = vmatpush1.msra.mxu0 0.0
    %394 = vmatprep.subr.mxu0 0.0
    %395 = vmatpush1.msra.mxu0 0.0
    %396 = vmatprep.subr.mxu0 0.0
    %397 = vmatpush1.msra.mxu0 0.0
    %398 = vmatprep.subr.mxu0 0.0
    %399 = vmatpush1.msra.mxu0 0.0
    %400 = vmatprep.subr.mxu0 0.0
    %401 = vmatpush1.msra.mxu0 0.0
    %402 = vmatprep.subr.mxu0 0.0
    %403 = vmatpush1.msra.mxu0 0.0
    %404 = vmatprep.subr.mxu0 0.0
    %405 = vmatpush1.msra.mxu0 %v66
    %406 = vmatprep.subr.mxu0 0.0
    %407 = vmatpush1.msra.mxu0 %v65
    %408 = vmatprep.subr.mxu0 0.0
    %409 = vmatpush1.msra.mxu0 %v64
    %410 = vmatprep.subr.mxu0 0.0
    %411 = vmatpush1.msra.mxu0 %v63
    %412 = vmatprep.subr.mxu0 0.0
    %413 = vmatpush1.msra.mxu0 %v62
    %414 = vmatprep.subr.mxu0 0.0
    %415 = vmatpush1.msra.mxu0 %v61
    %416 = vmatprep.subr.mxu0 0.0
    %417 = vmatpush1.msra.mxu0 %v60
    %418 = vmatprep.subr.mxu0 0.0
    %419 = vmatpush1.msra.mxu0 %v59
    %420 = vmatprep.subr.mxu0 0.0
    %421 = vmatpush2.msra.mxu0 0.0
    %422 = vmatprep.subr.mxu0 0.0
    %423 = vmatpush2.msra.mxu0 0.0
    %424 = vmatprep.subr.mxu0 0.0
    %425 = vmatpush2.msra.mxu0 0.0
    %426 = vmatprep.subr.mxu0 0.0
    %427 = vmatpush2.msra.mxu0 0.0
    %428 = vmatprep.subr.mxu0 0.0
    %429 = vmatpush2.msra.mxu0 0.0
    %430 = vmatprep.subr.mxu0 0.0
    %431 = vmatpush2.msra.mxu0 0.0
    %432 = vmatprep.subr.mxu0 0.0
    %433 = vmatpush2.msra.mxu0 0.0
    %434 = vmatprep.subr.mxu0 0.0
    %435 = vmatpush2.msra.mxu0 0.0
    %436 = vmatprep.subr.mxu0 0.0
    %437 = vmatpush2.msra.mxu0 0.0
    %438 = vmatprep.subr.mxu0 0.0
    %439 = vmatpush2.msra.mxu0 0.0
    %440 = vmatprep.subr.mxu0 0.0
    %441 = vmatpush2.msra.mxu0 0.0
    %442 = vmatprep.subr.mxu0 0.0
    %443 = vmatpush2.msra.mxu0 0.0
    %444 = vmatprep.subr.mxu0 0.0
    %445 = vmatpush2.msra.mxu0 0.0
    %446 = vmatprep.subr.mxu0 0.0
    %447 = vmatpush2.msra.mxu0 0.0
    %448 = vmatprep.subr.mxu0 0.0
    %449 = vmatpush2.msra.mxu0 0.0
    %450 = vmatprep.subr.mxu0 0.0
    %451 = vmatpush2.msra.mxu0 0.0
    %452 = vmatprep.mubr.f32.mxu0 0.0
    %453 = vmatmul.mubr.f32.gmra.mxu0 %v383
    %v454 = vpop.f32.mrf.mxu0
    %v455 = vadd.f32 %v380, %v454
    %v456 = vpop.f32.mrf.mxu0
    %457 = vmatprep.mubr.f32.mxu0 0.0
    %458 = vmatmul.mubr.f32.gmra.mxu0 %v386
    %v459 = vpop.f32.mrf.mxu0
    %v460 = vadd.f32 %v380, %v459
    %v461 = vpop.f32.mrf.mxu0
    %462 = vdwg.mxu0
    %v463 = vmax.f32 %v455, 0.0
    %v464 = vmax.f32 %v460, 0.0
    %v465 = vlaneseq
    %v466 = vshrl.u32 %v465, 7
    %v467 = vsub.s32 0, %v466
    %v468 = vrot.slane %v73, %v467
    %469 = vmatprep.subr.mxu0 0.0
    %470 = vmatpush1.msra.mxu0 0.0
    %471 = vmatprep.subr.mxu0 0.0
    %472 = vmatpush1.msra.mxu0 0.0
    %473 = vmatprep.subr.mxu0 0.0
    %474 = vmatpush1.msra.mxu0 0.0
    %475 = vmatprep.subr.mxu0 0.0
    %476 = vmatpush1.msra.mxu0 0.0
    %477 = vmatprep.subr.mxu0 0.0
    %478 = vmatpush1.msra.mxu0 0.0
    %479 = vmatprep.subr.mxu0 0.0
    %480 = vmatpush1.msra.mxu0 0.0
    %481 = vmatprep.subr.mxu0 0.0
    %482 = vmatpush1.msra.mxu0 0.0
    %483 = vmatprep.subr.mxu0 0.0
    %484 = vmatpush1.msra.mxu0 0.0
    %485 = vmatprep.subr.mxu0 0.0
    %486 = vmatpush1.msra.mxu0 0.0
    %487 = vmatprep.subr.mxu0 0.0
    %488 = vmatpush1.msra.mxu0 0.0
    %489 = vmatprep.subr.mxu0 0.0
    %490 = vmatpush1.msra.mxu0 0.0
    %491 = vmatprep.subr.mxu0 0.0
    %492 = vmatpush1.msra.mxu0 %v72
    %493 = vmatprep.subr.mxu0 0.0
    %494 = vmatpush1.msra.mxu0 %v71
    %495 = vmatprep.subr.mxu0 0.0
    %496 = vmatpush1.msra.mxu0 %v70
    %497 = vmatprep.subr.mxu0 0.0
    %498 = vmatpush1.msra.mxu0 %v69
    %499 = vmatprep.subr.mxu0 0.0
    %500 = vmatpush1.msra.mxu0 %v68
    %501 = vmatprep.subr.mxu0 0.0
    %502 = vmatpush2.msra.mxu0 0.0
    %503 = vmatprep.subr.mxu0 0.0
    %504 = vmatpush2.msra.mxu0 0.0
    %505 = vmatprep.subr.mxu0 0.0
    %506 = vmatpush2.msra.mxu0 0.0
    %507 = vmatprep.subr.mxu0 0.0
    %508 = vmatpush2.msra.mxu0 0.0
    %509 = vmatprep.subr.mxu0 0.0
    %510 = vmatpush2.msra.mxu0 0.0
    %511 = vmatprep.subr.mxu0 0.0
    %512 = vmatpush2.msra.mxu0 0.0
    %513 = vmatprep.subr.mxu0 0.0
    %514 = vmatpush2.msra.mxu0 0.0
    %515 = vmatprep.subr.mxu0 0.0
    %516 = vmatpush2.msra.mxu0 0.0
    %517 = vmatprep.subr.mxu0 0.0
    %518 = vmatpush2.msra.mxu0 0.0
    %519 = vmatprep.subr.mxu0 0.0
    %520 = vmatpush2.msra.mxu0 0.0
    %521 = vmatprep.subr.mxu0 0.0
    %522 = vmatpush2.msra.mxu0 0.0
    %523 = vmatprep.subr.mxu0 0.0
    %524 = vmatpush2.msra.mxu0 0.0
    %525 = vmatprep.subr.mxu0 0.0
    %526 = vmatpush2.msra.mxu0 0.0
    %527 = vmatprep.subr.mxu0 0.0
    %528 = vmatpush2.msra.mxu0 0.0
    %529 = vmatprep.subr.mxu0 0.0
    %530 = vmatpush2.msra.mxu0 0.0
    %531 = vmatprep.subr.mxu0 0.0
    %532 = vmatpush2.msra.mxu0 0.0
    %533 = vmatprep.mubr.f32.mxu0 0.0
    %534 = vmatmul.mubr.f32.gmra.mxu0 %v295
    %v535 = vpop.f32.mrf.mxu0
    %v536 = vadd.f32 %v468, %v535
    %v537 = vpop.f32.mrf.mxu0
    %538 = vdwg.mxu0
    %v539 = vxor.u32 %v536, 2147483648
    %v540 = vmul.f32 %v539, 1.442695
    %v541 = vpow.pop %v540
    %v542 = vadd.f32 %v541, 1.0
    %v543 = vrcp.pop %v542
    %v544 = vmul.f32 1.0, %v543
    %vm545 = vcmask 244736
    %546 = vst.msk [vmem:[#allocation5] sm:$0xff] %vm545, %v544
    %547 = vst [vmem:[%s2] sm:$0xff] %v463
    %548 = vst [vmem:[%s2 + $0x8] sm:$0xff] %v464
    %549 = vst.msk [vmem:[%s3] sm:$0xff] %vm293, %v250
    %550 = vst.msk [vmem:[%s3 + $0x8] sm:$0xff] %vm293, %v251
    %551 = vst.msk [vmem:[%s4] sm:$0xff] %vm276, %v270
    %552 = vst.msk [vmem:[%s4 + $0x8] sm:$0xff] %vm276, %v271
    // Predicated region
    $region14: #{_mlsurv_apply.1} parent=1 // pred_check
      _
    $region15: #{_mlsurv_apply.1} parent=1 // pred_check_branch
      %554 = sbr.rel (0) target = $region17
    $region16: #{_mlsurv_apply.1} parent=1 // pred_region
      _
    $region17: #{_mlsurv_apply.1} parent=1 // pred_fallthru
      _
    // Predicated region
    $region18: #{_mlsurv_apply.1} parent=1 // pred_check
      _
    $region19: #{_mlsurv_apply.1} parent=1 // pred_check_branch
      %556 = sbr.rel (0) target = $region21
    $region20: #{_mlsurv_apply.1} parent=1 // pred_region
      _
    $region21: #{_mlsurv_apply.1} parent=1 // pred_fallthru
      _
    // Predicated region
    $region22: #{_mlsurv_apply.1} parent=1 // pred_check
      _
    $region23: #{_mlsurv_apply.1} parent=1 // pred_check_branch
      %558 = sbr.rel (0) target = $region25
    $region24: #{_mlsurv_apply.1} parent=1 // pred_region
      _
    $region25: #{_mlsurv_apply.1} parent=1 // pred_fallthru
      _
    // Predicated region
    $region26: #{_mlsurv_apply.1} parent=1 // pred_check
      _
    $region27: #{_mlsurv_apply.1} parent=1 // pred_check_branch
      %560 = sbr.rel (0) target = $region29
    $region28: #{_mlsurv_apply.1} parent=1 // pred_region
      %s562 = ssub.s32 128, 128
      %563 = vsyncadd [#allocation4], %s562
      %s565 = sshll.u32 [#allocation5], 4
      %s566 = int_to_ptr.vmem [resolvable:$true] %s565
      %568 = dma.vmem_to_hbm [thread:$0]  %s566, 128, %s5, [#allocation4]
    $region29: #{_mlsurv_apply.1} parent=1 // pred_fallthru
      _
    // Predicated region
    $region30: #{_mlsurv_apply.1} parent=1 // pred_check
      _
    $region31: #{_mlsurv_apply.1} parent=1 // pred_check_branch
      %570 = sbr.rel (0) target = $region33
    $region32: #{_mlsurv_apply.1} parent=1 // pred_region
      _
    $region33: #{_mlsurv_apply.1} parent=1 // pred_fallthru
      _
    // Predicated region
    $region34: #{_mlsurv_apply.1} parent=1 // pred_check
      _
    $region35: #{_mlsurv_apply.1} parent=1 // pred_check_branch
      %572 = sbr.rel (0) target = $region37
    $region36: #{_mlsurv_apply.1} parent=1 // pred_region
      _
    $region37: #{_mlsurv_apply.1} parent=1 // pred_fallthru
      _
    // Predicated region
    $region38: #{_mlsurv_apply.1} parent=1 // pred_check
      _
    $region39: #{_mlsurv_apply.1} parent=1 // pred_check_branch
      %574 = sbr.rel (0) target = $region41
    $region40: #{_mlsurv_apply.1} parent=1 // pred_region
      _
    $region41: #{_mlsurv_apply.1} parent=1 // pred_fallthru
      _
    // Predicated region
    $region42: #{_mlsurv_apply.1} parent=1 // pred_check
      _
    $region43: #{_mlsurv_apply.1} parent=1 // pred_check_branch
      %576 = sbr.rel (0) target = $region45
    $region44: #{_mlsurv_apply.1} parent=1 // pred_region
      %577 = dma.done [#allocation4], 128
    $region45: #{_mlsurv_apply.1} parent=1 // pred_fallthru
      _
    %578 = vsyncpa [#allocation3], 1
    %579 = vsyncpa [#allocation4], 1

</llo_original>
